<compile_context>
chip_gen: v7x
topology: tpu7x:2x2x1
jax: 0.10.0
libtpu: 0.0.40
codegen_flags: <defaults>
</compile_context>

<pallas_src>
import jax
import jax.numpy as jnp
from jax.experimental import pallas as pl
from jax.experimental.pallas import tpu as pltpu


def _mlp_kernel(x_ref, w1_ref, b1_ref, w2_ref, b2_ref, o_ref):
    # Layer 1: (TB, D) @ (D, H) on the MXU, f32 accumulate; bias + ReLU on VPU.
    h = jnp.dot(x_ref[...], w1_ref[...], preferred_element_type=jnp.float32)
    h = jnp.maximum(h + b1_ref[...], 0.0)                     # (TB, H)
    # Layer 2 (H -> 1): broadcast-multiply + lane reduction instead of a
    # padded matmul — output stays (TB, 1), no dead MXU columns.
    y = jnp.sum(h * w2_ref[...], axis=-1, keepdims=True) + b2_ref[...]
    o_ref[...] = y.astype(o_ref.dtype)


_MAX_TB = 2048  # rows per batch tile (multiple of 8 sublanes)


@jax.jit
def neural_network_forward(x, w1, b1, w2, b2):
    """x: (B, D) f32; w1: (D, H); b1: (H,); w2: (H, 1); b2: (1,).

    Returns (B,) f32 — matches PyTorch `self.model(X).squeeze(1)`.
    Weights are stored transposed vs torch (in_dim, out_dim) so the kernel
    computes plain x @ W + b.
    """
    B, D = x.shape
    H = w1.shape[1]

    # Metadata-only reshapes so every operand is 2-D in VMEM.
    b1_r = b1.reshape(1, H)
    w2_r = w2.reshape(1, H)   # (H, 1) column -> (1, H) row
    b2_r = b2.reshape(1, 1)

    # Batch tile: full batch when small (full-extent block, exempt from the
    # (8,128) divisibility rule); otherwise 2048-row tiles (multiple of 8
    # sublanes — Pallas masks the trailing partial tile).
    TB = B if B <= _MAX_TB else _MAX_TB
    grid = (pl.cdiv(B, TB),)

    out = pl.pallas_call(
        _mlp_kernel,
        out_shape=jax.ShapeDtypeStruct((B, 1), jnp.float32),
        grid_spec=pltpu.PrefetchScalarGridSpec(
            num_scalar_prefetch=0,
            grid=grid,
            in_specs=[
                pl.BlockSpec((TB, D), lambda i: (i, 0)),   # x: tiled over batch
                pl.BlockSpec((D, H), lambda i: (0, 0)),    # w1: VMEM-resident
                pl.BlockSpec((1, H), lambda i: (0, 0)),    # b1
                pl.BlockSpec((1, H), lambda i: (0, 0)),    # w2 as a row
                pl.BlockSpec((1, 1), lambda i: (0, 0)),    # b2
            ],
            out_specs=pl.BlockSpec((TB, 1), lambda i: (i, 0)),
        ),
        compiler_params=pltpu.CompilerParams(
            dimension_semantics=("parallel",),
        ),
    )(x, w1, b1_r, w2_r, b2_r)

    # squeeze(1)
    return out[:, 0]


def init_params(key, input_dimension, hidden=42, out=1):
    """Deterministic synthetic init (shapes mirror nn.Linear(D,42), nn.Linear(42,1))."""
    k1, k2, k3, k4 = jax.random.split(key, 4)
    bound1 = 1.0 / jnp.sqrt(input_dimension)
    bound2 = 1.0 / jnp.sqrt(hidden)
    w1 = jax.random.uniform(k1, (input_dimension, hidden), jnp.float32, -bound1, bound1)
    b1 = jax.random.uniform(k2, (hidden,), jnp.float32, -bound1, bound1)
    w2 = jax.random.uniform(k3, (hidden, out), jnp.float32, -bound2, bound2)
    b2 = jax.random.uniform(k4, (out,), jnp.float32, -bound2, bound2)
    return w1, b1, w2, b2


def _ref_forward(x, w1, b1, w2, b2):
    return (jnp.maximum(x @ w1 + b1, 0.0) @ w2 + b2)[:, 0]


if __name__ == "__main__":
    key = jax.random.PRNGKey(0)
    kx, kx2, kp = jax.random.split(key, 3)

    D = 93  # ML2021Spring HW1 COVID feature count
    w1, b1, w2, b2 = init_params(kp, D)

    # Small batch (single full-extent tile).
    B = 8
    x = jax.random.normal(kx, (B, D), jnp.float32)
    y = jax.block_until_ready(neural_network_forward(x, w1, b1, w2, b2))
    ref = _ref_forward(x, w1, b1, w2, b2)
    assert y.shape == (B,)
    assert jnp.allclose(y, ref, atol=1e-5, rtol=1e-5)

    # Larger batch (exercises the tiled / pipelined "parallel" grid path,
    # including a trailing partial tile).
    B2 = 4100
    x2 = jax.random.normal(kx2, (B2, D), jnp.float32)
    y2 = jax.block_until_ready(neural_network_forward(x2, w1, b1, w2, b2))
    ref2 = _ref_forward(x2, w1, b1, w2, b2)
    assert y2.shape == (B2,)
    assert jnp.allclose(y2, ref2, atol=1e-5, rtol=1e-5)

    print("KERNEL_OK")
</pallas_src>

<mosaic_0001>
module attributes {stable_mosaic.version = 11 : i64} {
  func.func @_mlp_kernel(%arg0: i32, %arg1: memref<8x93xf32, #tpu.memory_space<vmem>>, %arg2: memref<93x42xf32, #tpu.memory_space<vmem>>, %arg3: memref<1x42xf32, #tpu.memory_space<vmem>>, %arg4: memref<1x42xf32, #tpu.memory_space<vmem>>, %arg5: memref<1x1xf32, #tpu.memory_space<vmem>>, %arg6: memref<8x1xf32, #tpu.memory_space<vmem>>) attributes {dimension_semantics = [#tpu.dimension_semantics<parallel>], iteration_bounds = array<i64: 1>, scalar_prefetch = 0 : i64, scratch_operands = 0 : i64, tpu.core_type = #tpu.core_type<tc>, window_params = [{transform_indices = @transform_0, window_bounds = array<i64: 8, 93>}, {pipeline_mode = #tpu.pipeline_mode<synchronous>, transform_indices = @transform_1, window_bounds = array<i64: 93, 42>}, {pipeline_mode = #tpu.pipeline_mode<synchronous>, transform_indices = @transform_2, window_bounds = array<i64: 1, 42>}, {pipeline_mode = #tpu.pipeline_mode<synchronous>, transform_indices = @transform_3, window_bounds = array<i64: 1, 42>}, {pipeline_mode = #tpu.pipeline_mode<synchronous>, transform_indices = @transform_4, window_bounds = array<i64: 1, 1>}, {transform_indices = @transform_5, window_bounds = array<i64: 8, 1>}]} {
    %c0 = arith.constant 0 : index
    %c0_0 = arith.constant 0 : index
    %0 = vector.load %arg1[%c0, %c0_0] : memref<8x93xf32, #tpu.memory_space<vmem>>, vector<8x93xf32>
    %c0_1 = arith.constant 0 : index
    %c0_2 = arith.constant 0 : index
    %1 = vector.load %arg2[%c0_1, %c0_2] : memref<93x42xf32, #tpu.memory_space<vmem>>, vector<93x42xf32>
    %cst = arith.constant dense<0.000000e+00> : vector<8x42xf32>
    %2 = tpu.matmul %0, %1, %cst {dimension_numbers = #tpu.dot_dimension_numbers<[1], [0], [0], [1], [0, 0, 1, 1], [], []>} : vector<8x93xf32>, vector<93x42xf32>, vector<8x42xf32> -> vector<8x42xf32>
    %c0_3 = arith.constant 0 : index
    %c0_4 = arith.constant 0 : index
    %3 = vector.load %arg3[%c0_3, %c0_4] : memref<1x42xf32, #tpu.memory_space<vmem>>, vector<1x42xf32>
    %4 = vector.broadcast %3 : vector<1x42xf32> to vector<8x42xf32>
    %5 = arith.addf %2, %4 : vector<8x42xf32>
    %cst_5 = arith.constant 0.000000e+00 : f32
    %6 = vector.broadcast %cst_5 : f32 to vector<8x42xf32>
    %7 = arith.maximumf %5, %6 : vector<8x42xf32>
    %c0_6 = arith.constant 0 : index
    %c0_7 = arith.constant 0 : index
    %8 = vector.load %arg4[%c0_6, %c0_7] : memref<1x42xf32, #tpu.memory_space<vmem>>, vector<1x42xf32>
    %9 = vector.broadcast %8 : vector<1x42xf32> to vector<8x42xf32>
    %10 = arith.mulf %7, %9 : vector<8x42xf32>
    %cst_8 = arith.constant dense<0.000000e+00> : vector<8xf32>
    %11 = vector.multi_reduction <add>, %10, %cst_8 [1] : vector<8x42xf32> to vector<8xf32>
    %12 = vector.shape_cast %11 : vector<8xf32> to vector<8x1xf32>
    %c0_9 = arith.constant 0 : index
    %c0_10 = arith.constant 0 : index
    %13 = vector.load %arg5[%c0_9, %c0_10] : memref<1x1xf32, #tpu.memory_space<vmem>>, vector<1x1xf32>
    %14 = vector.broadcast %13 : vector<1x1xf32> to vector<8x1xf32>
    %15 = arith.addf %12, %14 : vector<8x1xf32>
    %c0_11 = arith.constant 0 : index
    %c0_12 = arith.constant 0 : index
    %16 = vector.load %arg6[%c0_11, %c0_12] : memref<8x1xf32, #tpu.memory_space<vmem>>, vector<8x1xf32>
    tpu.vector_store %arg6[%c0_11, %c0_12], %15 {strides = array<i32>} : memref<8x1xf32, #tpu.memory_space<vmem>>, vector<8x1xf32>,
    return
  }
  func.func @transform_0(%arg0: i32) -> (i32, i32) {
    %c0_i32 = arith.constant 0 : i32
    %c0_i32_0 = arith.constant 0 : i32
    return %arg0, %c0_i32 : i32, i32
  }
  func.func @transform_1(%arg0: i32) -> (i32, i32) {
    %c0_i32 = arith.constant 0 : i32
    %c0_i32_0 = arith.constant 0 : i32
    %c0_i32_1 = arith.constant 0 : i32
    return %c0_i32, %c0_i32_0 : i32, i32
  }
  func.func @transform_2(%arg0: i32) -> (i32, i32) {
    %c0_i32 = arith.constant 0 : i32
    %c0_i32_0 = arith.constant 0 : i32
    %c0_i32_1 = arith.constant 0 : i32
    return %c0_i32, %c0_i32_0 : i32, i32
  }
  func.func @transform_3(%arg0: i32) -> (i32, i32) {
    %c0_i32 = arith.constant 0 : i32
    %c0_i32_0 = arith.constant 0 : i32
    %c0_i32_1 = arith.constant 0 : i32
    return %c0_i32, %c0_i32_0 : i32, i32
  }
  func.func @transform_4(%arg0: i32) -> (i32, i32) {
    %c0_i32 = arith.constant 0 : i32
    %c0_i32_0 = arith.constant 0 : i32
    %c0_i32_1 = arith.constant 0 : i32
    return %c0_i32, %c0_i32_0 : i32, i32
  }
  func.func @transform_5(%arg0: i32) -> (i32, i32) {
    %c0_i32 = arith.constant 0 : i32
    %c0_i32_0 = arith.constant 0 : i32
    return %arg0, %c0_i32 : i32, i32
  }
}

</mosaic_0001>

<llo_original>
// kernel: neural_network_forward.1
$region0: #{neural_network_forward.1}
  #allocation0 [shape = 'u32[]', space=smem, size = 0x4, offset = 0x4, fixed_abs, tag = 'smem constant byte address 0x4 - core index']
  #allocation1 [shape = 'u32[144,128]{1,0:T(1,128)}', space=vmem, size = 0x12000, scoped, tag = 'internal scratch']
  #allocation2 [shape = 'f32[1,1]{1,0:T(1,128)S(1)}', space=vmem, size = 0x200, scoped, tag = 'scoped memory for neural_network_forward.1']
  %s0 = inlined_call_operand.vmem [shape: f32[8,93], index: 0, kind: input, shape index: {}]
  %s1 = inlined_call_operand.vmem [shape: f32[93,42], index: 1, kind: input, shape index: {}]
  %s2 = inlined_call_operand.vmem [shape: f32[1,42], index: 2, kind: input, shape index: {}]
  %s3 = inlined_call_operand.vmem [shape: f32[1,42], index: 3, kind: input, shape index: {}]
  %s4 = inlined_call_operand.<no memory space> [shape: f32[1,1], index: 4, kind: input, shape index: {}]
  %s5 = inlined_call_operand.vmem [shape: f32[8,1], index: 5, kind: output, shape index: {}]
  %s6 = sld [smem:[#allocation0]]
  $region30: #{neural_network_forward.1} parent=0
    _
  %s8 = ssub.s32 1, %s6
  %s9 = scalar_select 0, %s8, %s6
  %v10 = vstv %s4
  %11 = vst [vmem:[#allocation2] sm:$0x1] %v10
  // Predicated region
  $region2: #{neural_network_forward.1} parent=0 // pred_check
    _
  $region3: #{neural_network_forward.1} parent=0 // pred_check_branch
    %13 = sbr.rel (0) target = $region5
  $region4: #{neural_network_forward.1} parent=0 // pred_region
    _
  $region5: #{neural_network_forward.1} parent=0 // pred_fallthru
    _
  // Predicated region
  $region6: #{neural_network_forward.1} parent=0 // pred_check
    _
  $region7: #{neural_network_forward.1} parent=0 // pred_check_branch
    %15 = sbr.rel (0) target = $region9
  $region8: #{neural_network_forward.1} parent=0 // pred_region
    _
  $region9: #{neural_network_forward.1} parent=0 // pred_fallthru
    _
  // Predicated region
  $region10: #{neural_network_forward.1} parent=0 // pred_check
    _
  $region11: #{neural_network_forward.1} parent=0 // pred_check_branch
    %17 = sbr.rel (0) target = $region13
  $region12: #{neural_network_forward.1} parent=0 // pred_region
    _
  $region13: #{neural_network_forward.1} parent=0 // pred_fallthru
    _
  // Predicated region
  $region14: #{neural_network_forward.1} parent=0 // pred_check
    _
  $region15: #{neural_network_forward.1} parent=0 // pred_check_branch
    %19 = sbr.rel (0) target = $region17
  $region16: #{neural_network_forward.1} parent=0 // pred_region
    _
  $region17: #{neural_network_forward.1} parent=0 // pred_fallthru
    _
  // Predicated region
  $region18: #{neural_network_forward.1} parent=0 // pred_check
    _
  $region19: #{neural_network_forward.1} parent=0 // pred_check_branch
    %21 = sbr.rel (0) target = $region21
  $region20: #{neural_network_forward.1} parent=0 // pred_region
    _
  $region21: #{neural_network_forward.1} parent=0 // pred_fallthru
    _
  %v22 = vld [vmem:[%s0] sm:$0xff]
  %v23 = vld [vmem:[%s1] sm:$0xff]
  %v24 = vld [vmem:[%s1 + $0x8] sm:$0xff]
  %v25 = vld [vmem:[%s1 + $0x10] sm:$0xff]
  %v26 = vld [vmem:[%s1 + $0x18] sm:$0xff]
  %v27 = vld [vmem:[%s1 + $0x20] sm:$0xff]
  %v28 = vld [vmem:[%s1 + $0x28] sm:$0xff]
  %v29 = vld [vmem:[%s1 + $0x30] sm:$0xff]
  %v30 = vld [vmem:[%s1 + $0x38] sm:$0xff]
  %v31 = vld [vmem:[%s1 + $0x40] sm:$0xff]
  %v32 = vld [vmem:[%s1 + $0x48] sm:$0xff]
  %v33 = vld [vmem:[%s1 + $0x50] sm:$0xff]
  %v34 = vld [vmem:[%s1 + $0x58] sm:$0x1f]
  %v35 = vld [vmem:[%s2] sm:$0x1]
  %v37 = vlaneseq
  %v38 = vshrl.u32 %v37, 7
  %v39 = vsub.s32 0, %v38
  %v40 = vrot.slane %v35, %v39
  %vm42 = vcmask 760832
  %v44 = vsel %vm42, %v22, 0
  %vm46 = vcmask 1044480
  %v48 = vsel %vm46, %v34, 0
  %50 = vmatprep.subr.mxu0 0.0
  %51 = vmatpush1.msra.mxu0 %v23
  %52 = vmatprep.subr.mxu0 0.0
  %53 = vmatpush1.msra.mxu0 %v24
  %54 = vmatprep.subr.mxu0 0.0
  %55 = vmatpush1.msra.mxu0 %v25
  %56 = vmatprep.subr.mxu0 0.0
  %57 = vmatpush1.msra.mxu0 %v26
  %58 = vmatprep.subr.mxu0 0.0
  %59 = vmatpush1.msra.mxu0 %v27
  %60 = vmatprep.subr.mxu0 0.0
  %61 = vmatpush1.msra.mxu0 %v28
  %62 = vmatprep.subr.mxu0 0.0
  %63 = vmatpush1.msra.mxu0 %v29
  %64 = vmatprep.subr.mxu0 0.0
  %65 = vmatpush1.msra.mxu0 %v30
  %66 = vmatprep.subr.mxu0 0.0
  %67 = vmatpush1.msra.mxu0 %v31
  %68 = vmatprep.subr.mxu0 0.0
  %69 = vmatpush1.msra.mxu0 %v32
  %70 = vmatprep.subr.mxu0 0.0
  %71 = vmatpush1.msra.mxu0 %v33
  %72 = vmatprep.subr.mxu0 0.0
  %73 = vmatpush1.msra.mxu0 %v48
  %74 = vmatprep.subr.mxu0 0.0
  %75 = vmatpush1.msra.mxu0 0.0
  %76 = vmatprep.subr.mxu0 0.0
  %77 = vmatpush1.msra.mxu0 0.0
  %78 = vmatprep.subr.mxu0 0.0
  %79 = vmatpush1.msra.mxu0 0.0
  %80 = vmatprep.subr.mxu0 0.0
  %81 = vmatpush1.msra.mxu0 0.0
  %82 = vmatprep.subr.mxu0 0.0
  %83 = vmatpush1.msra.mxu0 0.0
  %84 = vmatprep.subr.mxu0 0.0
  %85 = vmatpush1.msra.mxu0 0.0
  %86 = vmatprep.subr.mxu0 0.0
  %87 = vmatpush1.msra.mxu0 0.0
  %88 = vmatprep.subr.mxu0 0.0
  %89 = vmatpush1.msra.mxu0 0.0
  %90 = vmatprep.subr.mxu0 0.0
  %91 = vmatpush1.msra.mxu0 0.0
  %92 = vmatprep.subr.mxu0 0.0
  %93 = vmatpush1.msra.mxu0 0.0
  %94 = vmatprep.subr.mxu0 0.0
  %95 = vmatpush1.msra.mxu0 0.0
  %96 = vmatprep.subr.mxu0 0.0
  %97 = vmatpush1.msra.mxu0 0.0
  %98 = vmatprep.subr.mxu0 0.0
  %99 = vmatpush1.msra.mxu0 0.0
  %100 = vmatprep.subr.mxu0 0.0
  %101 = vmatpush1.msra.mxu0 0.0
  %102 = vmatprep.subr.mxu0 0.0
  %103 = vmatpush1.msra.mxu0 0.0
  %104 = vmatprep.subr.mxu0 0.0
  %105 = vmatpush1.msra.mxu0 0.0
  %106 = vmatprep.subr.mxu0 0.0
  %107 = vmatpush1.msra.mxu0 0.0
  %108 = vmatprep.subr.mxu0 0.0
  %109 = vmatpush1.msra.mxu0 0.0
  %110 = vmatprep.subr.mxu0 0.0
  %111 = vmatpush1.msra.mxu0 0.0
  %112 = vmatprep.subr.mxu0 0.0
  %113 = vmatpush1.msra.mxu0 0.0
  %114 = vmatprep.mubr.f32.mxu0 0.0
  %115 = vmatmul.mubr.f32.gmra.mrb[0].mxu0 %v44
  %v116 = vpop.f32.mrb[0].mxu0
  %v117 = vadd.f32 %v40, %v116
  %v118 = vpop.f32.mrb[0].mxu0
  %119 = vdwg.mxu0
  %v120 = vmax.f32 %v117, 0.0
  %v121 = vld [vmem:[%s3] sm:$0x1]
  %v123 = vlaneseq
  %v124 = vshrl.u32 %v123, 7
  %v125 = vsub.s32 0, %v124
  %v126 = vrot.slane %v121, %v125
  %v128 = vmul.f32 %v120, %v126
  %vm129 = vcmask 343040
  %v130 = vsel %vm129, %v128, 0.0
  %131 = vadd.xlane.f32.xlu0 %v130
  %v132 = vpop.xlane.xlu0 %131
  %v133 = vld [vmem:[#allocation2] sm:$0x1]
  %v135 = vlaneseq
  %v136 = vshrl.u32 %v135, 7
  %v137 = vsub.s32 0, %v136
  %v138 = vrot.slane %v133, %v137
  %v140 = vadd.f32 %v132, %v138
  %vm141 = vcmask 7168
  %142 = vst.msk [vmem:[%s5] sm:$0xff] %vm141, %v140
  // Predicated region
  $region22: #{neural_network_forward.1} parent=0 // pred_check
    _
  $region23: #{neural_network_forward.1} parent=0 // pred_check_branch
    %144 = sbr.rel (0) target = $region25
  $region24: #{neural_network_forward.1} parent=0 // pred_region
    _
  $region25: #{neural_network_forward.1} parent=0 // pred_fallthru
    _
  // Predicated region
  $region26: #{neural_network_forward.1} parent=0 // pred_check
    _
  $region27: #{neural_network_forward.1} parent=0 // pred_check_branch
    %146 = sbr.rel (0) target = $region29
  $region28: #{neural_network_forward.1} parent=0 // pred_region
    _
  $region29: #{neural_network_forward.1} parent=0 // pred_fallthru
    _

</llo_original>
